<compile_context>
chip_gen: v6e
topology: v6e:2x2x1
jax: 0.10.0
libtpu: 0.0.40
codegen_flags: <defaults>
</compile_context>

<pallas_src>
import functools

import jax
import jax.numpy as jnp
from jax import lax
from jax.experimental import pallas as pl
from jax.experimental.pallas import tpu as pltpu


def _onehot_kernel(idx_ref, out_ref, *, vocab_axis: int, tv: int):
    # idx_ref: (TN, 1) int32 block of token ids (padded rows carry -1)
    # out_ref: (TN, TV) block of the one-hot output; vocab block j covers
    #          columns [j*TV, (j+1)*TV) of the (128-padded) vocab axis.
    tn, tv_blk = out_ref.shape
    j = pl.program_id(vocab_axis)
    # Shift the skinny (TN, 1) index instead of adding j*tv to the (TN, TV) iota:
    # same result, ~TV/1 fewer full-width VALU adds per block.
    target = idx_ref[...] - j * tv                                  # (TN, 1)
    cols = lax.broadcasted_iota(jnp.int32, (tn, tv_blk), 1)         # (TN, TV)
    out_ref[...] = (cols == target).astype(out_ref.dtype)


def _round_up(x: int, m: int) -> int:
    return ((x + m - 1) // m) * m


def _pick_tile(padded: int, unit: int, max_tile: int, min_tile: int):
    """Pick a tile (multiple of `unit`, within [min_tile, max_tile]) minimizing the
    extra padding needed so that the padded extent is a multiple of the tile.
    Ties go to the largest tile (fewest grid steps).  Returns (tile, new_padded)."""
    max_tile = max(unit, (min(max_tile, padded) // unit) * unit)
    min_tile = max(unit, min((min_tile // unit) * unit, max_tile))
    best_tile = max_tile
    best_waste = (-padded) % max_tile
    t = max_tile - unit
    while t >= min_tile and best_waste > 0:
        waste = (-padded) % t
        if waste < best_waste:
            best_tile, best_waste = t, waste
        t -= unit
    return best_tile, padded + best_waste


def one_hot_embedding(
    x: jax.Array,
    vocab_size: int,
    *,
    row_tile: int = 512,       # v6e/v7x: 1024 is fine too (still < 32 MiB scoped VMEM)
    vocab_tile: int = 2048,
    out_dtype=jnp.float32,     # pass jnp.bfloat16 (2x) / jnp.int8 / float8 (4x) to cut HBM writes
) -> jax.Array:
    """Equivalent of OneHotEmbedding(vocab_size).forward(x): returns (..., V)."""
    orig_shape = x.shape
    idx = x.astype(jnp.int32).reshape(-1, 1)                        # (N, 1)
    n = idx.shape[0]
    itemsize = jnp.dtype(out_dtype).itemsize

    if n == 0:
        return jnp.zeros((*orig_shape, vocab_size), dtype=out_dtype)

    # Sublane multiple depends on output dtype packing (f32: 8, bf16: 16, int8/fp8: 32).
    sublane = {4: 8, 2: 16, 1: 32}.get(itemsize, 8)

    # Vocab axis: pad only to a multiple of 128, then pick a 128-multiple tile that
    # divides (or nearly divides) it — avoids writing up to tv-128 garbage columns/row.
    v_pad128 = _round_up(vocab_size, 128)
    tv, v_pad = _pick_tile(v_pad128, 128, vocab_tile, max(128, vocab_tile // 4))

    # Row axis: pad only to the sublane multiple, then pick a sublane-multiple tile
    # minimizing residual padding — avoids padding e.g. 600 rows up to 1024.
    n_pad_sub = _round_up(n, sublane)
    tn, n_pad = _pick_tile(n_pad_sub, sublane, row_tile, max(sublane, row_tile // 4))

    if n_pad != n:
        # Padded rows get index -1 (out of range) -> all-zero rows in-kernel.
        idx = jnp.pad(idx, ((0, n_pad - n), (0, 0)), constant_values=-1)

    grid_rows = n_pad // tn
    grid_voc = v_pad // tv

    # Put the axis with more blocks first so a v7x megacore always has >= 2 blocks
    # to shard on the leading parallel axis.  Both axes are embarrassingly parallel.
    if grid_rows >= grid_voc:
        grid = (grid_rows, grid_voc)
        vocab_axis = 1
        idx_spec = pl.BlockSpec((tn, 1), lambda i, j: (i, 0))
        out_spec = pl.BlockSpec((tn, tv), lambda i, j: (i, j))
    else:
        grid = (grid_voc, grid_rows)
        vocab_axis = 0
        idx_spec = pl.BlockSpec((tn, 1), lambda j, i: (i, 0))
        out_spec = pl.BlockSpec((tn, tv), lambda j, i: (i, j))

    kernel = functools.partial(_onehot_kernel, vocab_axis=vocab_axis, tv=tv)

    cost = pl.CostEstimate(
        flops=0,
        transcendentals=0,
        bytes_accessed=n_pad * v_pad * itemsize + n_pad * 4,
    )

    out = pl.pallas_call(
        kernel,
        out_shape=jax.ShapeDtypeStruct((n_pad, v_pad), out_dtype),
        grid_spec=pltpu.PrefetchScalarGridSpec(
            num_scalar_prefetch=0,
            grid=grid,
            in_specs=[idx_spec],
            out_specs=out_spec,
        ),
        compiler_params=pltpu.CompilerParams(
            dimension_semantics=("parallel", "parallel")),
        cost_estimate=cost,
    )(idx)

    # Slice only when padding actually exists (the slice is a full extra HBM copy);
    # for aligned shapes the kernel output is returned directly.
    if n_pad != n or v_pad != vocab_size:
        out = out[:n, :vocab_size]
    return out.reshape(*orig_shape, vocab_size)


if __name__ == "__main__":
    key = jax.random.PRNGKey(0)
    k1, k2, k3 = jax.random.split(key, 3)

    # Case 1: lane-aligned vocab, float32 — exact match to the PyTorch module.
    vocab1 = 128
    x1 = jax.random.randint(k1, (2, 8), 0, vocab1, dtype=jnp.int32)
    e1 = jax.block_until_ready(one_hot_embedding(x1, vocab1))
    ref1 = jax.nn.one_hot(x1, vocab1, dtype=jnp.float32)
    assert e1.shape == (2, 8, vocab1), e1.shape
    assert e1.dtype == jnp.float32
    assert bool(jnp.all(e1 == ref1))

    # Case 2: non-128-multiple vocab (lane padding + conditional slice path).
    vocab2 = 100
    x2 = jax.random.randint(k2, (2, 8), 0, vocab2, dtype=jnp.int32)
    e2 = jax.block_until_ready(one_hot_embedding(x2, vocab2))
    ref2 = jax.nn.one_hot(x2, vocab2, dtype=jnp.float32)
    assert e2.shape == (2, 8, vocab2), e2.shape
    assert bool(jnp.all(e2 == ref2))

    # Case 3: bf16 output (halves HBM writes; 0/1 exact) + ragged row count (row padding
    # path with -1 sentinel) + vocab not a multiple of the tile.
    vocab3 = 300
    x3 = jax.random.randint(k3, (3, 5), 0, vocab3, dtype=jnp.int32)
    e3 = jax.block_until_ready(one_hot_embedding(x3, vocab3, out_dtype=jnp.bfloat16))
    ref3 = jax.nn.one_hot(x3, vocab3, dtype=jnp.bfloat16)
    assert e3.shape == (3, 5, vocab3), e3.shape
    assert e3.dtype == jnp.bfloat16
    assert bool(jnp.all(e3 == ref3))

    print("KERNEL_OK")
</pallas_src>

<mosaic_0001>
module attributes {stable_mosaic.version = 11 : i64} {
  func.func @_onehot_kernel(%arg0: i32, %arg1: i32, %arg2: memref<16x1xi32, #tpu.memory_space<vmem>>, %arg3: memref<16x128xf32, #tpu.memory_space<vmem>>) attributes {dimension_semantics = [#tpu.dimension_semantics<parallel>, #tpu.dimension_semantics<parallel>], iteration_bounds = array<i64: 1, 1>, scalar_prefetch = 0 : i64, scratch_operands = 0 : i64, tpu.core_type = #tpu.core_type<tc>, window_params = [{transform_indices = @transform_0, window_bounds = array<i64: 16, 1>}, {transform_indices = @transform_1, window_bounds = array<i64: 16, 128>}]} {
    %c0 = arith.constant 0 : index
    %c0_0 = arith.constant 0 : index
    %0 = vector.load %arg2[%c0, %c0_0] : memref<16x1xi32, #tpu.memory_space<vmem>>, vector<16x1xi32>
    %c128_i32 = arith.constant 128 : i32
    %1 = arith.muli %arg1, %c128_i32 : i32
    %2 = vector.broadcast %1 : i32 to vector<16x1xi32>
    %3 = arith.subi %0, %2 : vector<16x1xi32>
    %4 = tpu.iota {dimensions = array<i32: 1>} : vector<16x128xi32>
    %5 = vector.broadcast %3 : vector<16x1xi32> to vector<16x128xi32>
    %6 = arith.cmpi eq, %4, %5 : vector<16x128xi32>
    %7 = arith.extui %6 : vector<16x128xi1> to vector<16x128xi32>
    %8 = arith.sitofp %7 : vector<16x128xi32> to vector<16x128xf32>
    %c0_1 = arith.constant 0 : index
    %c0_2 = arith.constant 0 : index
    %9 = vector.load %arg3[%c0_1, %c0_2] : memref<16x128xf32, #tpu.memory_space<vmem>>, vector<16x128xf32>
    tpu.vector_store %arg3[%c0_1, %c0_2], %8 {strides = array<i32>} : memref<16x128xf32, #tpu.memory_space<vmem>>, vector<16x128xf32>,
    return
  }
  func.func @transform_0(%arg0: i32, %arg1: i32) -> (i32, i32) {
    %c0_i32 = arith.constant 0 : i32
    %c0_i32_0 = arith.constant 0 : i32
    return %arg0, %c0_i32 : i32, i32
  }
  func.func @transform_1(%arg0: i32, %arg1: i32) -> (i32, i32) {
    %c0_i32 = arith.constant 0 : i32
    return %arg0, %arg1 : i32, i32
  }
}

</mosaic_0001>

<llo_original>
// kernel: tpu_custom_call.1
$region0: #{tpu_custom_call.1}
  #allocation0 [shape = 'u32[]', space=smem, size = 0x4, offset = 0x4, fixed_abs, tag = 'smem constant byte address 0x4 - core index']
  #allocation1 [shape = 'u32[144,128]{1,0:T(1,128)}', space=vmem, size = 0x12000, scoped, tag = 'internal scratch']
  %s0 = inlined_call_operand.vmem [shape: s32[16,1], index: 0, kind: input, shape index: {}]
  %s1 = inlined_call_operand.hbm [shape: f32[16,128], index: 1, kind: output, shape index: {}]
  %s2 = sld [smem:[#allocation0]]
  $region14: #{tpu_custom_call.1} parent=0
    _
  %s4 = ssub.s32 1, %s2
  %s5 = scalar_select 0, %s4, %s2
  $region1: #{tpu_custom_call.1} parent=0
    #allocation2 [shape = 'u8[8192]{0}', space=vmem, size = 0x2000, scoped, tag = 'output window, operand 0, single buffered']
    #allocation3 [shape = 's32[1]{0}', space=sflag, size = 0x4, scoped, tag = 'scoped memory for tpu_custom_call.1']
    %6 = vsyncpa [#allocation3], 0
    // Predicated region
    $region2: #{tpu_custom_call.1} parent=1 // pred_check
      _
    $region3: #{tpu_custom_call.1} parent=1 // pred_check_branch
      %8 = sbr.rel (0) target = $region5
    $region4: #{tpu_custom_call.1} parent=1 // pred_region
      _
    $region5: #{tpu_custom_call.1} parent=1 // pred_fallthru
      _
    %v9 = vld [vmem:[%s0] sm:$0xff]
    %v10 = vld [vmem:[%s0 + $0x8] sm:$0xff]
    %s11 = smul.u32 0, 128
    %v12 = vstv %s11
    %v13 = vsub.s32 %v9, %v12
    %v14 = vsub.s32 %v10, %v12
    %v15 = vlaneseq
    %v16 = vand.u32 %v15, 127
    %17 = vset.pattern.permute.xlu0 0
    %18 = vperm.xlu0 %17, %v13
    %v19 = vpop.permute.xlu0 %18
    %20 = vset.pattern.permute.xlu0 0
    %21 = vperm.xlu0 %20, %v14
    %v22 = vpop.permute.xlu0 %21
    %vm23 = vcmp.eq.s32.totalorder %v16, %v19
    %vm24 = vcmp.eq.s32.totalorder %v16, %v22
    %v25 = vsel %vm23, 1, 0
    %v26 = vsel %vm24, 1, 0
    %v27 = vcvt.s32.f32 %v25
    %v28 = vcvt.s32.f32 %v26
    %29 = vst [vmem:[#allocation2] sm:$0xff] %v27
    %30 = vst [vmem:[#allocation2 + $0x8] sm:$0xff] %v28
    // Predicated region
    $region6: #{tpu_custom_call.1} parent=1 // pred_check
      _
    $region7: #{tpu_custom_call.1} parent=1 // pred_check_branch
      %32 = sbr.rel (0) target = $region9
    $region8: #{tpu_custom_call.1} parent=1 // pred_region
      %s34 = ssub.s32 256, 256
      %35 = vsyncadd [#allocation3], %s34
      %s36 = sshll.u32 [#allocation2], 4
      %s37 = int_to_ptr.vmem [resolvable:$true] %s36
      %42 = dma.vmem_to_hbm [thread:$0]  %s37, 256, %s1, [#allocation3], 128, 128, 8
    $region9: #{tpu_custom_call.1} parent=1 // pred_fallthru
      _
    // Predicated region
    $region10: #{tpu_custom_call.1} parent=1 // pred_check
      _
    $region11: #{tpu_custom_call.1} parent=1 // pred_check_branch
      %44 = sbr.rel (0) target = $region13
    $region12: #{tpu_custom_call.1} parent=1 // pred_region
      %45 = dma.done [#allocation3], 256
    $region13: #{tpu_custom_call.1} parent=1 // pred_fallthru
      _
    %46 = vsyncpa [#allocation3], 1

</llo_original>
